<compile_context>
chip_gen: v7x
topology: tpu7x:2x2x1
jax: 0.10.0
libtpu: 0.0.40
codegen_flags: <defaults>
</compile_context>

<pallas_src>
import math
import functools

import numpy as np
import jax
import jax.numpy as jnp
from jax.experimental import pallas as pl
from jax.experimental.pallas import tpu as pltpu

_GCONST_ = -0.9189385332046727


# ----------------------------------------------------------------------------
# positional encoding (host glue; exact port of positionalencoding2d)
# ----------------------------------------------------------------------------
def positionalencoding2d(D, H, W):
    if D % 4 != 0:
        raise ValueError("dim must be divisible by 4, got {}".format(D))
    P = np.zeros((D, H, W), dtype=np.float32)
    d = D // 2
    div_term = np.exp(np.arange(0.0, d, 2.0) * -(math.log(10000.0) / d))
    pos_w = np.arange(0.0, W)[:, None]
    pos_h = np.arange(0.0, H)[:, None]
    P[0:d:2, :, :] = np.repeat(np.sin(pos_w * div_term).T[:, None, :], H, axis=1)
    P[1:d:2, :, :] = np.repeat(np.cos(pos_w * div_term).T[:, None, :], H, axis=1)
    P[d::2, :, :] = np.repeat(np.sin(pos_h * div_term).T[:, :, None], W, axis=2)
    P[d + 1::2, :, :] = np.repeat(np.cos(pos_h * div_term).T[:, :, None], W, axis=2)
    return P  # (D, H, W) numpy


# ----------------------------------------------------------------------------
# tile selection: largest multiple-of-128 divisor of E that fits the per-step
# VMEM budget, preferring >=2 grid steps (even count) so both v7x TensorCores
# get work under dimension_semantics=("parallel",).
# ----------------------------------------------------------------------------
def _pick_tile(E, per_lane_bytes, vmem_budget_bytes=24 << 20, cap=16384):
    if E % 128 != 0:
        return E                       # small / odd E: single full block
    budget_tn = max(128, (vmem_budget_bytes // max(per_lane_bytes, 1)) // 128 * 128)
    tmax = min(cap, budget_tn, E)
    cands = [t for t in range(128, tmax + 1, 128) if E % t == 0]
    if not cands:
        return E
    even2 = [t for t in cands if (E // t) >= 2 and (E // t) % 2 == 0]
    ge2 = [t for t in cands if (E // t) >= 2]
    for group in (even2, ge2, cands):
        if group:
            return max(group)
    return E


# ----------------------------------------------------------------------------
# Fused per-layer kernel: encoder 1x1-conv+ReLU (VPU FMAs), conditional affine
# coupling flow (MXU), get_logp + log_prob.  Channels on sublanes, samples on
# lanes -> lane-dense (1, TN) output rows.
# ----------------------------------------------------------------------------
def _cflow_layer_kernel(x_ref, ew_ref, eb_ref, w1e_ref, cb_ref, w2_ref, b2_ref,
                        lp_ref, *, C, c1, c2, Cin):
    # --- synthetic encoder: K=Cin (tiny) contraction as unrolled VPU FMAs
    x = x_ref[...]                                        # (Cin, TN) f32
    ew = ew_ref[...]                                      # (C,  Cin) f32
    acc = ew[:, 0:1] * x[0:1, :]                          # (C, TN) f32
    for k in range(1, Cin):
        acc = acc + ew[:, k:k + 1] * x[k:k + 1, :]
    e = jnp.maximum(acc + eb_ref[...], 0.0)               # (C, TN) f32

    e1 = e[:c1, :]                                        # (c1, TN) f32
    e2 = e[c1:, :]                                        # (c2, TN) f32

    # --- coupling subnet; batch-invariant cond part pre-folded into cb_ref
    #     (cb = w1_cond @ pos + b1, precomputed once per layer)
    h = jnp.dot(w1e_ref[...], e1.astype(jnp.bfloat16),
                preferred_element_type=jnp.float32)       # (Hd, TN) f32
    h = jnp.maximum(h + cb_ref[...], 0.0)

    # --- fused scale / translate heads: one MXU push, split along sublanes
    st = jnp.dot(w2_ref[...], h.astype(jnp.bfloat16),
                 preferred_element_type=jnp.float32) + b2_ref[...]  # (2*c2, TN)
    s = jnp.tanh(st[:c2, :])                              # soft-clamped scale
    t = st[c2:, :]

    z2 = e2 * jnp.exp(s) + t                              # z = [e1, z2]

    # per-sample reductions over channels (sublanes) -> lane-dense rows
    log_jac = jnp.sum(s, axis=0, keepdims=True)           # (1, TN)
    zsq = (jnp.sum(e1 * e1, axis=0, keepdims=True)
           + jnp.sum(z2 * z2, axis=0, keepdims=True))     # (1, TN)

    # get_logp: C * _GCONST_ - 0.5 * sum(z**2) + logdet_J ; log_prob = logp / C
    logp = float(C) * _GCONST_ - 0.5 * zsq + log_jac
    lp_ref[...] = logp * (1.0 / float(C))                 # (1, TN) lane-dense


def cflow_layer(xT, enc_p, dec_p, cond_bias_S, B, S, C):
    """xT: (Cin, E) f32, cond_bias_S: (Hd, S) f32 -> log_prob (E,) f32."""
    Cin, E = xT.shape
    Hd = dec_p["w1e"].shape[0]
    c1 = C // 2
    c2 = C - c1

    # per-lane VMEM footprint estimate: double-buffered DMA blocks + f32
    # intermediates (e, h, st) kept live per step.
    per_lane = 4 * (2 * (Cin + Hd + 1) + 2 * (C + Hd + 2 * c2 + 4))
    TN = _pick_tile(E, per_lane)
    nb = E // TN

    # condition bias: reuse the (Hd, S) spatial table across the batch when
    # TN | S; otherwise materialize the batch-tiled (Hd, E) version (tiny).
    if S % TN == 0:
        cond = cond_bias_S
        cb_blocks = S // TN
    else:
        cond = jnp.tile(cond_bias_S, (1, B))
        cb_blocks = nb
    if cb_blocks == 1:
        cmap = lambda i: (0, 0)
    elif cb_blocks == nb:
        cmap = lambda i: (0, i)
    else:
        cmap = lambda i: (0, i % cb_blocks)

    weight_bytes = ((enc_p["w"].size + enc_p["b"].size) * 4
                    + dec_p["w1e"].size * 2 + dec_p["w2"].size * 2
                    + dec_p["b2"].size * 4)
    vmem_est = per_lane * TN + 2 * weight_bytes + (4 << 20)
    vmem_limit = int(min(max(vmem_est, 32 << 20), 48 << 20))  # < v7x 64 MiB phys

    kern = functools.partial(_cflow_layer_kernel, C=C, c1=c1, c2=c2, Cin=Cin)
    lp = pl.pallas_call(
        kern,
        out_shape=jax.ShapeDtypeStruct((1, E), jnp.float32),
        grid=(nb,),
        in_specs=[
            pl.BlockSpec((Cin, TN), lambda i: (0, i)),       # x tile
            pl.BlockSpec((C, Cin), lambda i: (0, 0)),        # enc weight (resident)
            pl.BlockSpec((C, 1), lambda i: (0, 0)),          # enc bias
            pl.BlockSpec((Hd, c1), lambda i: (0, 0)),        # subnet weight (e1 part)
            pl.BlockSpec((Hd, TN), cmap),                    # cond bias (hoisted)
            pl.BlockSpec((2 * c2, Hd), lambda i: (0, 0)),    # fused s/t head
            pl.BlockSpec((2 * c2, 1), lambda i: (0, 0)),
        ],
        out_specs=pl.BlockSpec((1, TN), lambda i: (0, i)),
        compiler_params=pltpu.CompilerParams(
            dimension_semantics=("parallel",),
            vmem_limit_bytes=vmem_limit),
    )(xT, enc_p["w"], enc_p["b"], dec_p["w1e"], cond, dec_p["w2"], dec_p["b2"])
    return lp.reshape(E)


# ----------------------------------------------------------------------------
# CFlow module (JAX/Pallas)
# ----------------------------------------------------------------------------
class CFlowPallas:
    def __init__(self, key, in_ch=3, pool_factors=(4, 8), feat_channels=(16, 32),
                 condition_vec=32, hidden=64):
        self.pool_factors = pool_factors
        self.feat_channels = feat_channels
        self.P = condition_vec
        self.hidden = hidden
        self.enc_params = []
        self.dec_params = []
        self._pos_cache = {}      # (H, W)   -> (P, S) table
        self._cond_cache = {}     # (l, H, W) -> (Hd, S) hoisted cond bias
        ks = jax.random.split(key, len(pool_factors))
        for cl, kl in zip(feat_channels, ks):
            k = jax.random.split(kl, 6)
            c1 = cl // 2
            c2 = cl - c1
            # encoder 1x1 conv, channels-major: (Cout, Cin)
            self.enc_params.append({
                "w": 0.3 * jax.random.normal(k[0], (cl, in_ch), jnp.float32),
                "b": 0.05 * jax.random.normal(k[1], (cl, 1), jnp.float32),
            })
            # decoder: split subnet weight (e1 part bf16 for MXU, cond part f32
            # kept for the once-per-layer hoisted precompute), fused s/t head.
            scale1 = 1.0 / math.sqrt(c1 + self.P)
            self.dec_params.append({
                "w1e": (scale1 * jax.random.normal(k[2], (hidden, c1), jnp.float32)
                        ).astype(jnp.bfloat16),
                "w1c": scale1 * jax.random.normal(k[5], (hidden, self.P), jnp.float32),
                "b1": 0.05 * jax.random.normal(k[3], (hidden, 1), jnp.float32),
                "w2": ((0.5 / math.sqrt(hidden)) *
                       jax.random.normal(k[4], (2 * c2, hidden), jnp.float32)
                       ).astype(jnp.bfloat16),
                "b2": jnp.zeros((2 * c2, 1), jnp.float32),
            })

    def _pos_table(self, H, W):
        key = (H, W)
        if key not in self._pos_cache:
            p = positionalencoding2d(self.P, H, W)            # (P, H, W) numpy
            self._pos_cache[key] = jnp.asarray(p.reshape(self.P, H * W))
        return self._pos_cache[key]                           # (P, S) f32

    def _cond_bias(self, l, H, W):
        key = (l, H, W)
        if key not in self._cond_cache:
            pos = self._pos_table(H, W)                       # (P, S)
            dp = self.dec_params[l]
            # hoisted batch-invariant half of the first subnet matmul
            self._cond_cache[key] = jnp.dot(dp["w1c"], pos) + dp["b1"]   # (Hd, S)
        return self._cond_cache[key]

    @staticmethod
    def _avg_pool_nchw(x, k):
        B, C, H, W = x.shape
        return x.reshape(B, C, H // k, k, W // k, k).mean(axis=(3, 5))

    def __call__(self, x):  # x: NCHW f32
        B = x.shape[0]
        height, width, test_dist = [], [], []
        test_loss = jnp.float32(0.0)                          # lazy device scalar
        test_count = 0
        for l, (kpool, Cl) in enumerate(zip(self.pool_factors, self.feat_channels)):
            xp = self._avg_pool_nchw(x, kpool)                # (B, Cin, H, W)
            _, Cin, H, W = xp.shape
            S = H * W
            E = B * S
            xT = jnp.transpose(xp, (1, 0, 2, 3)).reshape(Cin, E)   # (Cin, E)
            height.append(H)
            width.append(W)

            cond_bias = self._cond_bias(l, H, W)              # (Hd, S) f32

            # fused encoder + conditional flow + get_logp (one pallas_call)
            log_prob = cflow_layer(xT, self.enc_params[l], self.dec_params[l],
                                   cond_bias, B, S, Cl)       # (E,) f32

            # loss = -logsigmoid(log_prob); summed lazily, no host sync in loop
            loss = jax.nn.softplus(-log_prob)
            test_loss = test_loss + jnp.sum(loss)
            test_count += E
            test_dist.append(log_prob)
        self.test_loss = test_loss
        self.test_count = test_count
        return height, width, test_dist


# TODO(synk): the original encoder is an arbitrary pretrained backbone whose
# intermediate features are captured via torch forward hooks, and the decoders
# are multi-block FrEIA flows; both are replaced here by deterministic
# synthetic equivalents (pointwise-conv encoder, single affine-coupling flow).

if __name__ == "__main__":
    key = jax.random.PRNGKey(0)
    kx, kw = jax.random.split(key)
    x = jax.random.normal(kx, (2, 3, 64, 64), jnp.float32)    # NCHW input
    model = CFlowPallas(kw)
    height, width, test_dist = model(x)
    for td in test_dist:
        jax.block_until_ready(td)
    jax.block_until_ready(model.test_loss)
    assert height == [16, 8] and width == [16, 8]
    assert test_dist[0].shape == (2 * 16 * 16,)
    assert test_dist[1].shape == (2 * 8 * 8,)
    assert all(bool(jnp.all(jnp.isfinite(td))) for td in test_dist)
    assert bool(jnp.isfinite(model.test_loss))
    print("KERNEL_OK")
</pallas_src>

<mosaic_0001>
module attributes {stable_mosaic.version = 11 : i64} {
  func.func @_cflow_layer_kernel(%arg0: i32, %arg1: memref<3x256xf32, #tpu.memory_space<vmem>>, %arg2: memref<16x3xf32, #tpu.memory_space<vmem>>, %arg3: memref<16x1xf32, #tpu.memory_space<vmem>>, %arg4: memref<64x8xbf16, #tpu.memory_space<vmem>>, %arg5: memref<64x256xf32, #tpu.memory_space<vmem>>, %arg6: memref<16x64xbf16, #tpu.memory_space<vmem>>, %arg7: memref<16x1xf32, #tpu.memory_space<vmem>>, %arg8: memref<1x256xf32, #tpu.memory_space<vmem>>) attributes {dimension_semantics = [#tpu.dimension_semantics<parallel>], iteration_bounds = array<i64: 2>, scalar_prefetch = 0 : i64, scratch_operands = 0 : i64, tpu.core_type = #tpu.core_type<tc>, window_params = [{transform_indices = @transform_0, window_bounds = array<i64: 3, 256>}, {pipeline_mode = #tpu.pipeline_mode<synchronous>, transform_indices = @transform_1, window_bounds = array<i64: 16, 3>}, {pipeline_mode = #tpu.pipeline_mode<synchronous>, transform_indices = @transform_2, window_bounds = array<i64: 16, 1>}, {pipeline_mode = #tpu.pipeline_mode<synchronous>, transform_indices = @transform_3, window_bounds = array<i64: 64, 8>}, {pipeline_mode = #tpu.pipeline_mode<synchronous>, transform_indices = @transform_4, window_bounds = array<i64: 64, 256>}, {pipeline_mode = #tpu.pipeline_mode<synchronous>, transform_indices = @transform_5, window_bounds = array<i64: 16, 64>}, {pipeline_mode = #tpu.pipeline_mode<synchronous>, transform_indices = @transform_6, window_bounds = array<i64: 16, 1>}, {transform_indices = @transform_7, window_bounds = array<i64: 1, 256>}]} {
    %c0 = arith.constant 0 : index
    %c0_0 = arith.constant 0 : index
    %0 = vector.load %arg1[%c0, %c0_0] : memref<3x256xf32, #tpu.memory_space<vmem>>, vector<3x256xf32>
    %c0_1 = arith.constant 0 : index
    %c0_2 = arith.constant 0 : index
    %1 = vector.load %arg2[%c0_1, %c0_2] : memref<16x3xf32, #tpu.memory_space<vmem>>, vector<16x3xf32>
    %2 = vector.extract_strided_slice %1 {offsets = [0, 0], sizes = [16, 1], strides = [1, 1]} : vector<16x3xf32> to vector<16x1xf32>
    %3 = vector.extract_strided_slice %0 {offsets = [0, 0], sizes = [1, 256], strides = [1, 1]} : vector<3x256xf32> to vector<1x256xf32>
    %4 = vector.broadcast %2 : vector<16x1xf32> to vector<16x256xf32>
    %5 = vector.broadcast %3 : vector<1x256xf32> to vector<16x256xf32>
    %6 = arith.mulf %4, %5 : vector<16x256xf32>
    %7 = vector.extract_strided_slice %1 {offsets = [0, 1], sizes = [16, 1], strides = [1, 1]} : vector<16x3xf32> to vector<16x1xf32>
    %8 = vector.extract_strided_slice %0 {offsets = [1, 0], sizes = [1, 256], strides = [1, 1]} : vector<3x256xf32> to vector<1x256xf32>
    %9 = vector.broadcast %7 : vector<16x1xf32> to vector<16x256xf32>
    %10 = vector.broadcast %8 : vector<1x256xf32> to vector<16x256xf32>
    %11 = arith.mulf %9, %10 : vector<16x256xf32>
    %12 = arith.addf %6, %11 : vector<16x256xf32>
    %13 = vector.extract_strided_slice %1 {offsets = [0, 2], sizes = [16, 1], strides = [1, 1]} : vector<16x3xf32> to vector<16x1xf32>
    %14 = vector.extract_strided_slice %0 {offsets = [2, 0], sizes = [1, 256], strides = [1, 1]} : vector<3x256xf32> to vector<1x256xf32>
    %15 = vector.broadcast %13 : vector<16x1xf32> to vector<16x256xf32>
    %16 = vector.broadcast %14 : vector<1x256xf32> to vector<16x256xf32>
    %17 = arith.mulf %15, %16 : vector<16x256xf32>
    %18 = arith.addf %12, %17 : vector<16x256xf32>
    %c0_3 = arith.constant 0 : index
    %c0_4 = arith.constant 0 : index
    %19 = vector.load %arg3[%c0_3, %c0_4] : memref<16x1xf32, #tpu.memory_space<vmem>>, vector<16x1xf32>
    %20 = vector.broadcast %19 : vector<16x1xf32> to vector<16x256xf32>
    %21 = arith.addf %18, %20 : vector<16x256xf32>
    %cst = arith.constant 0.000000e+00 : f32
    %22 = vector.broadcast %cst : f32 to vector<16x256xf32>
    %23 = arith.maximumf %21, %22 : vector<16x256xf32>
    %24 = vector.extract_strided_slice %23 {offsets = [0, 0], sizes = [8, 256], strides = [1, 1]} : vector<16x256xf32> to vector<8x256xf32>
    %25 = vector.extract_strided_slice %23 {offsets = [8, 0], sizes = [8, 256], strides = [1, 1]} : vector<16x256xf32> to vector<8x256xf32>
    %c0_5 = arith.constant 0 : index
    %c0_6 = arith.constant 0 : index
    %26 = vector.load %arg4[%c0_5, %c0_6] : memref<64x8xbf16, #tpu.memory_space<vmem>>, vector<64x8xbf16>
    %27 = arith.truncf %24 : vector<8x256xf32> to vector<8x256xbf16>
    %cst_7 = arith.constant dense<0.000000e+00> : vector<64x256xf32>
    %28 = tpu.matmul %26, %27, %cst_7 {dimension_numbers = #tpu.dot_dimension_numbers<[1], [0], [0], [1], [0, 0, 1, 1], [], []>} : vector<64x8xbf16>, vector<8x256xbf16>, vector<64x256xf32> -> vector<64x256xf32>
    %c0_8 = arith.constant 0 : index
    %c0_9 = arith.constant 0 : index
    %29 = vector.load %arg5[%c0_8, %c0_9] : memref<64x256xf32, #tpu.memory_space<vmem>>, vector<64x256xf32>
    %30 = arith.addf %28, %29 : vector<64x256xf32>
    %cst_10 = arith.constant 0.000000e+00 : f32
    %31 = vector.broadcast %cst_10 : f32 to vector<64x256xf32>
    %32 = arith.maximumf %30, %31 : vector<64x256xf32>
    %c0_11 = arith.constant 0 : index
    %c0_12 = arith.constant 0 : index
    %33 = vector.load %arg6[%c0_11, %c0_12] : memref<16x64xbf16, #tpu.memory_space<vmem>>, vector<16x64xbf16>
    %34 = arith.truncf %32 : vector<64x256xf32> to vector<64x256xbf16>
    %cst_13 = arith.constant dense<0.000000e+00> : vector<16x256xf32>
    %35 = tpu.matmul %33, %34, %cst_13 {dimension_numbers = #tpu.dot_dimension_numbers<[1], [0], [0], [1], [0, 0, 1, 1], [], []>} : vector<16x64xbf16>, vector<64x256xbf16>, vector<16x256xf32> -> vector<16x256xf32>
    %c0_14 = arith.constant 0 : index
    %c0_15 = arith.constant 0 : index
    %36 = vector.load %arg7[%c0_14, %c0_15] : memref<16x1xf32, #tpu.memory_space<vmem>>, vector<16x1xf32>
    %37 = vector.broadcast %36 : vector<16x1xf32> to vector<16x256xf32>
    %38 = arith.addf %35, %37 : vector<16x256xf32>
    %39 = vector.extract_strided_slice %38 {offsets = [0, 0], sizes = [8, 256], strides = [1, 1]} : vector<16x256xf32> to vector<8x256xf32>
    %40 = math.tanh %39 : vector<8x256xf32>
    %41 = vector.extract_strided_slice %38 {offsets = [8, 0], sizes = [8, 256], strides = [1, 1]} : vector<16x256xf32> to vector<8x256xf32>
    %42 = math.exp %40 : vector<8x256xf32>
    %43 = arith.mulf %25, %42 : vector<8x256xf32>
    %44 = arith.addf %43, %41 : vector<8x256xf32>
    %cst_16 = arith.constant dense<0.000000e+00> : vector<256xf32>
    %45 = vector.multi_reduction <add>, %40, %cst_16 [0] : vector<8x256xf32> to vector<256xf32>
    %46 = vector.shape_cast %45 : vector<256xf32> to vector<1x256xf32>
    %47 = arith.mulf %24, %24 : vector<8x256xf32>
    %cst_17 = arith.constant dense<0.000000e+00> : vector<256xf32>
    %48 = vector.multi_reduction <add>, %47, %cst_17 [0] : vector<8x256xf32> to vector<256xf32>
    %49 = vector.shape_cast %48 : vector<256xf32> to vector<1x256xf32>
    %50 = arith.mulf %44, %44 : vector<8x256xf32>
    %cst_18 = arith.constant dense<0.000000e+00> : vector<256xf32>
    %51 = vector.multi_reduction <add>, %50, %cst_18 [0] : vector<8x256xf32> to vector<256xf32>
    %52 = vector.shape_cast %51 : vector<256xf32> to vector<1x256xf32>
    %53 = arith.addf %49, %52 : vector<1x256xf32>
    %cst_19 = arith.constant 5.000000e-01 : f32
    %54 = vector.broadcast %cst_19 : f32 to vector<1x256xf32>
    %55 = arith.mulf %54, %53 : vector<1x256xf32>
    %cst_20 = arith.constant -14.7030163 : f32
    %56 = vector.broadcast %cst_20 : f32 to vector<1x256xf32>
    %57 = arith.subf %56, %55 : vector<1x256xf32>
    %58 = arith.addf %57, %46 : vector<1x256xf32>
    %cst_21 = arith.constant 6.250000e-02 : f32
    %59 = vector.broadcast %cst_21 : f32 to vector<1x256xf32>
    %60 = arith.mulf %58, %59 : vector<1x256xf32>
    %c0_22 = arith.constant 0 : index
    %c0_23 = arith.constant 0 : index
    %61 = vector.load %arg8[%c0_22, %c0_23] : memref<1x256xf32, #tpu.memory_space<vmem>>, vector<1x256xf32>
    tpu.vector_store %arg8[%c0_22, %c0_23], %60 {strides = array<i32>} : memref<1x256xf32, #tpu.memory_space<vmem>>, vector<1x256xf32>,
    return
  }
  func.func @transform_0(%arg0: i32) -> (i32, i32) {
    %c0_i32 = arith.constant 0 : i32
    %c0_i32_0 = arith.constant 0 : i32
    return %c0_i32, %arg0 : i32, i32
  }
  func.func @transform_1(%arg0: i32) -> (i32, i32) {
    %c0_i32 = arith.constant 0 : i32
    %c0_i32_0 = arith.constant 0 : i32
    %c0_i32_1 = arith.constant 0 : i32
    return %c0_i32, %c0_i32_0 : i32, i32
  }
  func.func @transform_2(%arg0: i32) -> (i32, i32) {
    %c0_i32 = arith.constant 0 : i32
    %c0_i32_0 = arith.constant 0 : i32
    %c0_i32_1 = arith.constant 0 : i32
    return %c0_i32, %c0_i32_0 : i32, i32
  }
  func.func @transform_3(%arg0: i32) -> (i32, i32) {
    %c0_i32 = arith.constant 0 : i32
    %c0_i32_0 = arith.constant 0 : i32
    %c0_i32_1 = arith.constant 0 : i32
    return %c0_i32, %c0_i32_0 : i32, i32
  }
  func.func @transform_4(%arg0: i32) -> (i32, i32) {
    %c0_i32 = arith.constant 0 : i32
    %c0_i32_0 = arith.constant 0 : i32
    %c0_i32_1 = arith.constant 0 : i32
    return %c0_i32, %c0_i32_0 : i32, i32
  }
  func.func @transform_5(%arg0: i32) -> (i32, i32) {
    %c0_i32 = arith.constant 0 : i32
    %c0_i32_0 = arith.constant 0 : i32
    %c0_i32_1 = arith.constant 0 : i32
    return %c0_i32, %c0_i32_0 : i32, i32
  }
  func.func @transform_6(%arg0: i32) -> (i32, i32) {
    %c0_i32 = arith.constant 0 : i32
    %c0_i32_0 = arith.constant 0 : i32
    %c0_i32_1 = arith.constant 0 : i32
    return %c0_i32, %c0_i32_0 : i32, i32
  }
  func.func @transform_7(%arg0: i32) -> (i32, i32) {
    %c0_i32 = arith.constant 0 : i32
    %c0_i32_0 = arith.constant 0 : i32
    return %c0_i32, %arg0 : i32, i32
  }
}

</mosaic_0001>

<llo_original>
// kernel: tpu_custom_call.1
$region0: #{tpu_custom_call.1}
  #allocation0 [shape = 'u32[]', space=smem, size = 0x4, offset = 0x4, fixed_abs, tag = 'smem constant byte address 0x4 - core index']
  #allocation1 [shape = 'u32[144,128]{1,0:T(1,128)}', space=vmem, size = 0x12000, scoped, tag = 'internal scratch']
  %s0 = inlined_call_operand.vmem [shape: f32[3,512], index: 0, kind: input, shape index: {}]
  %s1 = inlined_call_operand.vmem [shape: f32[16,3], index: 1, kind: input, shape index: {}]
  %s2 = inlined_call_operand.vmem [shape: f32[16,1], index: 2, kind: input, shape index: {}]
  %s3 = inlined_call_operand.vmem [shape: bf16[64,8], index: 3, kind: input, shape index: {}]
  %s4 = inlined_call_operand.hbm [shape: f32[64,256], index: 4, kind: input, shape index: {}]
  %s5 = inlined_call_operand.vmem [shape: bf16[16,64], index: 5, kind: input, shape index: {}]
  %s6 = inlined_call_operand.vmem [shape: f32[16,1], index: 6, kind: input, shape index: {}]
  %s7 = inlined_call_operand.hbm [shape: f32[1,512], index: 7, kind: output, shape index: {}]
  %s8 = sld [smem:[#allocation0]]
  $region65: #{tpu_custom_call.1} parent=0
    _
  %s10 = ssub.s32 1, %s8
  %s11 = scalar_select 0, %s10, %s8
  $region1: #{tpu_custom_call.1} parent=0
    #allocation2 [shape = 'u8[65536]{0}', space=vmem, size = 0x10000, scoped, tag = 'input window, operand 4, single buffered']
    #allocation3 [shape = 's32[2]{0}', space=sflag, size = 0x8, scoped, tag = 'scoped memory for tpu_custom_call.1']
    #allocation4 [shape = 's32[2]{0}', space=sflag, size = 0x8, scoped, tag = 'scoped memory for tpu_custom_call.1']
    #allocation5 [shape = 'u8[2048]{0}', space=vmem, size = 0x800, scoped, tag = 'output window, operand 0']
    %12 = vsyncpa [#allocation3], 0
    %13 = vsyncpa [#allocation4], 0
    %s14 = scalar_lea.sflag [#allocation4], 1
    %15 = vsyncpa %s14, 0
    loop: start=0, step=1, limit=4
    $region2: #{tpu_custom_call.1} parent=1 // loop_pre_header
      _
    $region3: #{tpu_custom_call.1} parent=1 // loop_header
      %s17 = sphi 0, %s21
      %p18 = scmp.ge.s32.totalorder %s17, 4
      %s27 = sphi 0, %s29
      %s30 = sphi 0, %s27
      %s31 = sphi 0, %s30
      %s47 = sphi 0, %s31
      %s51 = sphi 0, %s51
      %s53 = sphi 0, %s51
      %s54 = sphi 0, %s53
      %s68 = sphi 0, %s54
      %s72 = sphi 0, %s72
      %s74 = sphi 0, %s72
      %s75 = sphi 0, %s74
      %s89 = sphi 0, %s75
      %s93 = sphi 0, %s93
      %s95 = sphi 0, %s93
      %s96 = sphi 0, %s95
      %s110 = sphi 0, %s96
      %s114 = sphi 0, %s114
      %s116 = sphi 0, %s114
      %s117 = sphi 0, %s116
      %s131 = sphi 0, %s117
      %s135 = sphi 0, %s135
      %s137 = sphi 0, %s135
      %s138 = sphi 0, %s137
      %s152 = sphi 0, %s138
      %s156 = sphi 0, %s156
      %s158 = sphi 0, %s156
      %s159 = sphi 0, %s158
      %s173 = sphi 0, %s159
      %s179 = sphi 0, %s181
      %s182 = sphi 0, %s179
      %s183 = sphi 0, %s182
      %s199 = sphi 0, %s183
    $region4: #{tpu_custom_call.1} parent=1 // loop_header_branch
      %20 = sbr.rel (%p18) target = $region8
    $region5: #{tpu_custom_call.1} parent=1 // loop_body
      %s22 = ssub.s32 %s17, 1
      %s23 = ssub.s32 %s17, 2
      %s24 = sadd.s32 %s17, 1
      %s25 = ssub.s32 %s17, %s24
      %p26 = scmp.eq.s32.totalorder %s25, 0
      %s28 = sadd.s32 %s27, 1
      %s29 = scalar_select %p26, %s27, %s28
      %p32 = pneg %p26
      %p33 = scmp.eq.s32.totalorder %s17, 1
      %p34 = por %p32, %p33
      %p35 = scmp.ne.s32.totalorder %s27, %s30
      %p36 = scmp.eq.s32.totalorder %s17, 0
      %p37 = por %p35, %p36
      %p38 = scmp.ne.s32.totalorder %s27, %s30
      %p39 = scmp.eq.s32.totalorder %s22, 1
      %p40 = por %p38, %p39
      %p41 = scmp.ne.s32.totalorder %s30, %s31
      %p42 = scmp.eq.s32.totalorder %s22, 0
      %p43 = por %p41, %p42
      %p44 = scmp.ne.s32.totalorder %s30, %s31
      %p45 = scmp.eq.s32.totalorder %s23, 1
      %p46 = por %p44, %p45
      %p48 = scmp.ne.s32.totalorder %s31, %s47
      %p49 = scmp.eq.s32.totalorder %s23, 0
      %p50 = por %p48, %p49
      %s52 = sadd.s32 %s51, 1
      %p55 = scmp.eq.s32.totalorder %s17, 1
      %p56 = scmp.ne.s32.totalorder %s51, %s53
      %p57 = scmp.eq.s32.totalorder %s17, 0
      %p58 = por %p56, %p57
      %p59 = scmp.ne.s32.totalorder %s51, %s53
      %p60 = scmp.eq.s32.totalorder %s22, 1
      %p61 = por %p59, %p60
      %p62 = scmp.ne.s32.totalorder %s53, %s54
      %p63 = scmp.eq.s32.totalorder %s22, 0
      %p64 = por %p62, %p63
      %p65 = scmp.ne.s32.totalorder %s53, %s54
      %p66 = scmp.eq.s32.totalorder %s23, 1
      %p67 = por %p65, %p66
      %p69 = scmp.ne.s32.totalorder %s54, %s68
      %p70 = scmp.eq.s32.totalorder %s23, 0
      %p71 = por %p69, %p70
      %s73 = sadd.s32 %s72, 1
      %p76 = scmp.eq.s32.totalorder %s17, 1
      %p77 = scmp.ne.s32.totalorder %s72, %s74
      %p78 = scmp.eq.s32.totalorder %s17, 0
      %p79 = por %p77, %p78
      %p80 = scmp.ne.s32.totalorder %s72, %s74
      %p81 = scmp.eq.s32.totalorder %s22, 1
      %p82 = por %p80, %p81
      %p83 = scmp.ne.s32.totalorder %s74, %s75
      %p84 = scmp.eq.s32.totalorder %s22, 0
      %p85 = por %p83, %p84
      %p86 = scmp.ne.s32.totalorder %s74, %s75
      %p87 = scmp.eq.s32.totalorder %s23, 1
      %p88 = por %p86, %p87
      %p90 = scmp.ne.s32.totalorder %s75, %s89
      %p91 = scmp.eq.s32.totalorder %s23, 0
      %p92 = por %p90, %p91
      %s94 = sadd.s32 %s93, 1
      %p97 = scmp.eq.s32.totalorder %s17, 1
      %p98 = scmp.ne.s32.totalorder %s93, %s95
      %p99 = scmp.eq.s32.totalorder %s17, 0
      %p100 = por %p98, %p99
      %p101 = scmp.ne.s32.totalorder %s93, %s95
      %p102 = scmp.eq.s32.totalorder %s22, 1
      %p103 = por %p101, %p102
      %p104 = scmp.ne.s32.totalorder %s95, %s96
      %p105 = scmp.eq.s32.totalorder %s22, 0
      %p106 = por %p104, %p105
      %p107 = scmp.ne.s32.totalorder %s95, %s96
      %p108 = scmp.eq.s32.totalorder %s23, 1
      %p109 = por %p107, %p108
      %p111 = scmp.ne.s32.totalorder %s96, %s110
      %p112 = scmp.eq.s32.totalorder %s23, 0
      %p113 = por %p111, %p112
      %s115 = sadd.s32 %s114, 1
      %p118 = scmp.eq.s32.totalorder %s17, 1
      %p119 = scmp.ne.s32.totalorder %s114, %s116
      %p120 = scmp.eq.s32.totalorder %s17, 0
      %p121 = por %p119, %p120
      %p122 = scmp.ne.s32.totalorder %s114, %s116
      %p123 = scmp.eq.s32.totalorder %s22, 1
      %p124 = por %p122, %p123
      %p125 = scmp.ne.s32.totalorder %s116, %s117
      %p126 = scmp.eq.s32.totalorder %s22, 0
      %p127 = por %p125, %p126
      %p128 = scmp.ne.s32.totalorder %s116, %s117
      %p129 = scmp.eq.s32.totalorder %s23, 1
      %p130 = por %p128, %p129
      %p132 = scmp.ne.s32.totalorder %s117, %s131
      %p133 = scmp.eq.s32.totalorder %s23, 0
      %p134 = por %p132, %p133
      %s136 = sadd.s32 %s135, 1
      %p139 = scmp.eq.s32.totalorder %s17, 1
      %p140 = scmp.ne.s32.totalorder %s135, %s137
      %p141 = scmp.eq.s32.totalorder %s17, 0
      %p142 = por %p140, %p141
      %p143 = scmp.ne.s32.totalorder %s135, %s137
      %p144 = scmp.eq.s32.totalorder %s22, 1
      %p145 = por %p143, %p144
      %p146 = scmp.ne.s32.totalorder %s137, %s138
      %p147 = scmp.eq.s32.totalorder %s22, 0
      %p148 = por %p146, %p147
      %p149 = scmp.ne.s32.totalorder %s137, %s138
      %p150 = scmp.eq.s32.totalorder %s23, 1
      %p151 = por %p149, %p150
      %p153 = scmp.ne.s32.totalorder %s138, %s152
      %p154 = scmp.eq.s32.totalorder %s23, 0
      %p155 = por %p153, %p154
      %s157 = sadd.s32 %s156, 1
      %p160 = scmp.eq.s32.totalorder %s17, 1
      %p161 = scmp.ne.s32.totalorder %s156, %s158
      %p162 = scmp.eq.s32.totalorder %s17, 0
      %p163 = por %p161, %p162
      %p164 = scmp.ne.s32.totalorder %s156, %s158
      %p165 = scmp.eq.s32.totalorder %s22, 1
      %p166 = por %p164, %p165
      %p167 = scmp.ne.s32.totalorder %s158, %s159
      %p168 = scmp.eq.s32.totalorder %s22, 0
      %p169 = por %p167, %p168
      %p170 = scmp.ne.s32.totalorder %s158, %s159
      %p171 = scmp.eq.s32.totalorder %s23, 1
      %p172 = por %p170, %p171
      %p174 = scmp.ne.s32.totalorder %s159, %s173
      %p175 = scmp.eq.s32.totalorder %s23, 0
      %p176 = por %p174, %p175
      %s177 = ssub.s32 %s17, %s24
      %p178 = scmp.eq.s32.totalorder %s177, 0
      %s180 = sadd.s32 %s179, 1
      %s181 = scalar_select %p178, %s179, %s180
      %p184 = pneg %p178
      %p185 = scmp.eq.s32.totalorder %s17, 1
      %p186 = por %p184, %p185
      %p187 = scmp.ne.s32.totalorder %s179, %s182
      %p188 = scmp.eq.s32.totalorder %s17, 0
      %p189 = por %p187, %p188
      %p190 = scmp.ne.s32.totalorder %s179, %s182
      %p191 = scmp.eq.s32.totalorder %s22, 1
      %p192 = por %p190, %p191
      %p193 = scmp.ne.s32.totalorder %s182, %s183
      %p194 = scmp.eq.s32.totalorder %s22, 0
      %p195 = por %p193, %p194
      %p196 = scmp.ne.s32.totalorder %s182, %s183
      %p197 = scmp.eq.s32.totalorder %s23, 1
      %p198 = por %p196, %p197
      %p200 = scmp.ne.s32.totalorder %s183, %s199
      %p201 = scmp.eq.s32.totalorder %s23, 0
      %p202 = por %p200, %p201
      %p203 = scmp.le.s32.totalorder 1, %s17
      %p204 = scmp.lt.s32.totalorder %s17, 3
      %p205 = pnand %p203, %p204
      %p206 = pneg %p205
      // Predicated region
      $region9: #{tpu_custom_call.1} parent=5 // pred_check
        _
      $region10: #{tpu_custom_call.1} parent=5 // pred_check_branch
        %208 = sbr.rel (%p205) target = $region12
      $region11: #{tpu_custom_call.1} parent=5 // pred_region
        %s209 = ssub.s32 %s17, 1
        // Predicated region
        $region13: #{tpu_custom_call.1} parent=11 // pred_check
          %p210 = pneg %p64
        $region14: #{tpu_custom_call.1} parent=11 // pred_check_branch
          %212 = sbr.rel (%p210) target = $region16
        $region15: #{tpu_custom_call.1} parent=11 // pred_region
          _
        $region16: #{tpu_custom_call.1} parent=11 // pred_fallthru
          _
        // Predicated region
        $region17: #{tpu_custom_call.1} parent=11 // pred_check
          %p213 = pneg %p85
        $region18: #{tpu_custom_call.1} parent=11 // pred_check_branch
          %215 = sbr.rel (%p213) target = $region20
        $region19: #{tpu_custom_call.1} parent=11 // pred_region
          _
        $region20: #{tpu_custom_call.1} parent=11 // pred_fallthru
          _
        // Predicated region
        $region21: #{tpu_custom_call.1} parent=11 // pred_check
          %p216 = pneg %p106
        $region22: #{tpu_custom_call.1} parent=11 // pred_check_branch
          %218 = sbr.rel (%p216) target = $region24
        $region23: #{tpu_custom_call.1} parent=11 // pred_region
          _
        $region24: #{tpu_custom_call.1} parent=11 // pred_fallthru
          _
        // Predicated region
        $region25: #{tpu_custom_call.1} parent=11 // pred_check
          %p219 = pneg %p127
        $region26: #{tpu_custom_call.1} parent=11 // pred_check_branch
          %221 = sbr.rel (%p219) target = $region28
        $region27: #{tpu_custom_call.1} parent=11 // pred_region
          %s223 = ssub.s32 2048, 2048
          %224 = vsyncadd [#allocation3], %s223
          %s225 = sshll.u32 [#allocation2], 4
          %s226 = int_to_ptr.vmem [resolvable:$true] %s225
          %231 = dma.hbm_to_vmem [thread:$0]  %s4, 2048, %s226, [#allocation3], 256, 256, 16
        $region28: #{tpu_custom_call.1} parent=11 // pred_fallthru
          _
        // Predicated region
        $region29: #{tpu_custom_call.1} parent=11 // pred_check
          %p232 = pneg %p148
        $region30: #{tpu_custom_call.1} parent=11 // pred_check_branch
          %234 = sbr.rel (%p232) target = $region32
        $region31: #{tpu_custom_call.1} parent=11 // pred_region
          _
        $region32: #{tpu_custom_call.1} parent=11 // pred_fallthru
          _
        // Predicated region
        $region33: #{tpu_custom_call.1} parent=11 // pred_check
          %p235 = pneg %p169
        $region34: #{tpu_custom_call.1} parent=11 // pred_check_branch
          %237 = sbr.rel (%p235) target = $region36
        $region35: #{tpu_custom_call.1} parent=11 // pred_region
          _
        $region36: #{tpu_custom_call.1} parent=11 // pred_fallthru
          _
      $region12: #{tpu_custom_call.1} parent=5 // pred_fallthru
        _
      %p238 = scmp.lt.s32.totalorder %s17, 2
      // Predicated region
      $region37: #{tpu_custom_call.1} parent=5 // pred_check
        %p239 = pneg %p238
      $region38: #{tpu_custom_call.1} parent=5 // pred_check_branch
        %241 = sbr.rel (%p239) target = $region40
      $region39: #{tpu_custom_call.1} parent=5 // pred_region
        // Predicated region
        $region41: #{tpu_custom_call.1} parent=39 // pred_check
          %p242 = pneg %p37
        $region42: #{tpu_custom_call.1} parent=39 // pred_check_branch
          %244 = sbr.rel (%p242) target = $region44
        $region43: #{tpu_custom_call.1} parent=39 // pred_region
          %s245 = smul.u32 2, %s17
          %p246 = scmp.lt.s32.totalorder %s245, 3
          %s247 = scalar_select %p246, %s245, 3
          %s248 = smul.addr %s247, 4
          %s249 = scalar_lea.vmem %s0, %s248
          %s250 = smul.u32 2, %s17
        $region44: #{tpu_custom_call.1} parent=39 // pred_fallthru
          _
      $region40: #{tpu_custom_call.1} parent=5 // pred_fallthru
        _
      %p251 = scmp.le.s32.totalorder 1, %s17
      %p252 = scmp.lt.s32.totalorder %s17, 3
      %p253 = pnand %p251, %p252
      %p254 = pneg %p253
      // Predicated region
      $region45: #{tpu_custom_call.1} parent=5 // pred_check
        _
      $region46: #{tpu_custom_call.1} parent=5 // pred_check_branch
        %256 = sbr.rel (%p253) target = $region48
      $region47: #{tpu_custom_call.1} parent=5 // pred_region
        %s257 = ssub.s32 %s17, 1
        // Predicated region
        $region49: #{tpu_custom_call.1} parent=47 // pred_check
          %p258 = pneg %p127
        $region50: #{tpu_custom_call.1} parent=47 // pred_check_branch
          %260 = sbr.rel (%p258) target = $region52
        $region51: #{tpu_custom_call.1} parent=47 // pred_region
          %261 = dma.done [#allocation3], 2048
        $region52: #{tpu_custom_call.1} parent=47 // pred_fallthru
          _
        %s262 = smul.u32 2, %s22
        %p263 = scmp.lt.s32.totalorder %s262, 3
        %s264 = scalar_select %p263, %s262, 3
        %s265 = smul.addr %s264, 4
        %s266 = scalar_lea.vmem %s0, %s265
        %p267 = pneg %p43
        %p268 = pneg %p40
        %p269 = pneg %p64
        %p270 = pneg %p61
        %p271 = pneg %p85
        %p272 = pneg %p82
        %p273 = pneg %p106
        %p274 = pneg %p103
        %p275 = pneg %p127
        %p276 = pneg %p124
        %p277 = pneg %p148
        %p278 = pneg %p145
        %p279 = pneg %p169
        %p280 = pneg %p166
        %p281 = pneg %p195
        %p282 = pneg %p192
        %s283 = sand.u32 %s182, 1
        %s284 = scalar_lea.sflag [#allocation4], %s283
        %s285 = sand.u32 %s182, 1
        %s286 = smul.addr %s285, 2
        %s287 = scalar_lea.vmem [#allocation5], %s286
        %s288 = smul.u32 2, %s22
        %p289 = scmp.lt.s32.totalorder %s288, 3
        %s290 = scalar_select %p289, %s288, 3
        %s291 = smul.addr %s290, 4
        %s292 = scalar_lea.vmem %s0, %s291
        %s293 = smul.u32 2, %s22
        %s294 = smul.u32 2, %s22
        %v296 = vld [vmem:[%s292] sm:$0x77]
        %v297 = vld [vmem:[%s1] sm:$0xff]
        %v298 = vld [vmem:[%s1 + $0x8] sm:$0xff]
        %300 = vset.pattern.permute.xlu0 0
        %301 = vperm.xlu0 %300, %v297
        %v302 = vpop.permute.xlu0 %301
        %305 = vset.pattern.permute.xlu0 0
        %306 = vperm.xlu0 %305, %v298
        %v307 = vpop.permute.xlu0 %306
        %v310 = vlaneseq
        %v311 = vshrl.u32 %v310, 7
        %v312 = vsub.s32 0, %v311
        %v313 = vrot.slane %v296, %v312
        %v314 = vlaneseq
        %v315 = vshrl.u32 %v314, 7
        %v316 = vsub.s32 4, %v315
        %v317 = vrot.slane %v296, %v316
        %v320 = vlaneseq
        %v321 = vshrl.u32 %v320, 7
        %v322 = vsub.s32 0, %v321
        %v323 = vrot.slane %v313, %v322
        %v324 = vlaneseq
        %v325 = vshrl.u32 %v324, 7
        %v326 = vsub.s32 0, %v325
        %v327 = vrot.slane %v317, %v326
        %v328 = vmul.f32 %v302, %v323
        %v329 = vmul.f32 %v302, %v327
        %v330 = vmul.f32 %v307, %v323
        %v331 = vmul.f32 %v307, %v327
        %332 = vset.pattern.permute.xlu0 1
        %333 = vperm.xlu0 %332, %v297
        %v334 = vpop.permute.xlu0 %333
        %336 = vset.pattern.permute.xlu0 1
        %337 = vperm.xlu0 %336, %v298
        %v338 = vpop.permute.xlu0 %337
        %v340 = vlaneseq
        %v341 = vshrl.u32 %v340, 7
        %v342 = vsub.s32 1, %v341
        %v343 = vrot.slane %v296, %v342
        %v344 = vlaneseq
        %v345 = vshrl.u32 %v344, 7
        %v346 = vsub.s32 5, %v345
        %v347 = vrot.slane %v296, %v346
        %v350 = vlaneseq
        %v351 = vshrl.u32 %v350, 7
        %v352 = vsub.s32 1, %v351
        %v353 = vrot.slane %v343, %v352
        %v354 = vlaneseq
        %v355 = vshrl.u32 %v354, 7
        %v356 = vsub.s32 1, %v355
        %v357 = vrot.slane %v347, %v356
        %v358 = vmul.f32 %v334, %v353
        %v359 = vmul.f32 %v334, %v357
        %v360 = vmul.f32 %v338, %v353
        %v361 = vmul.f32 %v338, %v357
        %v362 = vadd.f32 %v328, %v358
        %v363 = vadd.f32 %v329, %v359
        %v364 = vadd.f32 %v330, %v360
        %v365 = vadd.f32 %v331, %v361
        %366 = vset.pattern.permute.xlu0 2
        %367 = vperm.xlu0 %366, %v297
        %v368 = vpop.permute.xlu0 %367
        %370 = vset.pattern.permute.xlu0 2
        %371 = vperm.xlu0 %370, %v298
        %v372 = vpop.permute.xlu0 %371
        %v374 = vlaneseq
        %v375 = vshrl.u32 %v374, 7
        %v376 = vsub.s32 2, %v375
        %v377 = vrot.slane %v296, %v376
        %v378 = vlaneseq
        %v379 = vshrl.u32 %v378, 7
        %v380 = vsub.s32 6, %v379
        %v381 = vrot.slane %v296, %v380
        %v384 = vlaneseq
        %v385 = vshrl.u32 %v384, 7
        %v386 = vsub.s32 2, %v385
        %v387 = vrot.slane %v377, %v386
        %v388 = vlaneseq
        %v389 = vshrl.u32 %v388, 7
        %v390 = vsub.s32 2, %v389
        %v391 = vrot.slane %v381, %v390
        %v392 = vmul.f32 %v368, %v387
        %v393 = vmul.f32 %v368, %v391
        %v394 = vmul.f32 %v372, %v387
        %v395 = vmul.f32 %v372, %v391
        %v396 = vadd.f32 %v362, %v392
        %v397 = vadd.f32 %v363, %v393
        %v398 = vadd.f32 %v364, %v394
        %v399 = vadd.f32 %v365, %v395
        %v400 = vld [vmem:[%s2] sm:$0xff]
        %v401 = vld [vmem:[%s2 + $0x8] sm:$0xff]
        %403 = vset.pattern.permute.xlu0 0
        %404 = vperm.xlu0 %403, %v400
        %v405 = vpop.permute.xlu0 %404
        %408 = vset.pattern.permute.xlu0 0
        %409 = vperm.xlu0 %408, %v401
        %v410 = vpop.permute.xlu0 %409
        %v412 = vadd.f32 %v396, %v405
        %v413 = vadd.f32 %v397, %v405
        %v414 = vadd.f32 %v398, %v410
        %v415 = vadd.f32 %v399, %v410
        %v416 = vmax.f32 %v412, 0.0
        %v417 = vmax.f32 %v413, 0.0
        %v418 = vmax.f32 %v414, 0.0
        %v419 = vmax.f32 %v415, 0.0
        %v420 = vld [vmem:[%s3] sm:$0xf]
        %v421 = vld [vmem:[%s3 + $0x4] sm:$0xf]
        %v422 = vld [vmem:[%s3 + $0x8] sm:$0xf]
        %v423 = vld [vmem:[%s3 + $0xc] sm:$0xf]
        %v424 = vld [vmem:[%s3 + $0x10] sm:$0xf]
        %v425 = vld [vmem:[%s3 + $0x14] sm:$0xf]
        %v426 = vld [vmem:[%s3 + $0x18] sm:$0xf]
        %v427 = vld [vmem:[%s3 + $0x1c] sm:$0xf]
        %v428 = vpack.c.bf16 %v416, %v416
        %v429 = vpack.c.bf16 %v417, %v417
        %v430 = vld [vmem:[#allocation2] sm:$0xff]
        %v431 = vld [vmem:[#allocation2 + $0x8] sm:$0xff]
        %v432 = vld [vmem:[#allocation2 + $0x10] sm:$0xff]
        %v433 = vld [vmem:[#allocation2 + $0x18] sm:$0xff]
        %v434 = vld [vmem:[#allocation2 + $0x20] sm:$0xff]
        %v435 = vld [vmem:[#allocation2 + $0x28] sm:$0xff]
        %v436 = vld [vmem:[#allocation2 + $0x30] sm:$0xff]
        %v437 = vld [vmem:[#allocation2 + $0x38] sm:$0xff]
        %v438 = vld [vmem:[#allocation2 + $0x40] sm:$0xff]
        %v439 = vld [vmem:[#allocation2 + $0x48] sm:$0xff]
        %v440 = vld [vmem:[#allocation2 + $0x50] sm:$0xff]
        %v441 = vld [vmem:[#allocation2 + $0x58] sm:$0xff]
        %v442 = vld [vmem:[#allocation2 + $0x60] sm:$0xff]
        %v443 = vld [vmem:[#allocation2 + $0x68] sm:$0xff]
        %v444 = vld [vmem:[#allocation2 + $0x70] sm:$0xff]
        %v445 = vld [vmem:[#allocation2 + $0x78] sm:$0xff]
        %v454 = vunpack.c.l.b16 %v420
        %v455 = vunpack.c.l.b16 %v421
        %v456 = vunpack.c.l.b16 %v422
        %v457 = vunpack.c.l.b16 %v423
        %v458 = vunpack.c.l.b16 %v424
        %v459 = vunpack.c.l.b16 %v425
        %v460 = vunpack.c.l.b16 %v426
        %v461 = vunpack.c.l.b16 %v427
        %v462 = vpack.c.b16 %v455, %v454
        %v463 = vpack.c.b16 %v457, %v456
        %v464 = vpack.c.b16 %v459, %v458
        %v465 = vpack.c.b16 %v461, %v460
        %vm466 = vcmask 64512
        %v468 = vsel %vm466, %v462, 0
        %v471 = vsel %vm466, %v463, 0
        %v474 = vsel %vm466, %v464, 0
        %v477 = vsel %vm466, %v465, 0
        %vm479 = vcmask 1043456
        %v481 = vsel %vm479, %v428, 0
        %v484 = vsel %vm479, %v429, 0
        %486 = vmatprep.subr.bf16.mxu0 %v484
        %487 = vmatpush1.bf16.msra.mxu0 %v481
        %488 = vmatprep.subr.bf16.mxu0 0
        %489 = vmatpush1.bf16.msra.mxu0 0
        %490 = vmatprep.subr.bf16.mxu0 0
        %491 = vmatpush1.bf16.msra.mxu0 0
        %492 = vmatprep.subr.bf16.mxu0 0
        %493 = vmatpush1.bf16.msra.mxu0 0
        %494 = vmatprep.subr.bf16.mxu0 0
        %495 = vmatpush1.bf16.msra.mxu0 0
        %496 = vmatprep.subr.bf16.mxu0 0
        %497 = vmatpush1.bf16.msra.mxu0 0
        %498 = vmatprep.subr.bf16.mxu0 0
        %499 = vmatpush1.bf16.msra.mxu0 0
        %500 = vmatprep.subr.bf16.mxu0 0
        %501 = vmatpush1.bf16.msra.mxu0 0
        %502 = vmatprep.subr.bf16.mxu0 0
        %503 = vmatpush1.bf16.msra.mxu0 0
        %504 = vmatprep.subr.bf16.mxu0 0
        %505 = vmatpush1.bf16.msra.mxu0 0
        %506 = vmatprep.subr.bf16.mxu0 0
        %507 = vmatpush1.bf16.msra.mxu0 0
        %508 = vmatprep.subr.bf16.mxu0 0
        %509 = vmatpush1.bf16.msra.mxu0 0
        %510 = vmatprep.subr.bf16.mxu0 0
        %511 = vmatpush1.bf16.msra.mxu0 0
        %512 = vmatprep.subr.bf16.mxu0 0
        %513 = vmatpush1.bf16.msra.mxu0 0
        %514 = vmatprep.subr.bf16.mxu0 0
        %515 = vmatpush1.bf16.msra.mxu0 0
        %516 = vmatprep.subr.bf16.mxu0 0
        %517 = vmatpush1.bf16.msra.mxu0 0
        %518 = vmatprep.mubr.bf16.mxu0 0
        %519 = vmatmul.mubr.bf16.gmra.mrb[0].mxu0 %v468
        %v520 = vpop.f32.mrb[0].mxu0
        %v521 = vadd.f32 %v430, %v520
        %v522 = vpop.f32.mrb[0].mxu0
        %v523 = vadd.f32 %v431, %v522
        %v524 = vpop.f32.mrb[0].mxu0
        %v525 = vadd.f32 %v432, %v524
        %v526 = vpop.f32.mrb[0].mxu0
        %v527 = vadd.f32 %v433, %v526
        %528 = vmatprep.mubr.bf16.mxu0 0
        %529 = vmatmul.mubr.bf16.gmra.mrb[0].mxu0 %v471
        %v530 = vpop.f32.mrb[0].mxu0
        %v531 = vadd.f32 %v434, %v530
        %v532 = vpop.f32.mrb[0].mxu0
        %v533 = vadd.f32 %v435, %v532
        %v534 = vpop.f32.mrb[0].mxu0
        %v535 = vadd.f32 %v436, %v534
        %v536 = vpop.f32.mrb[0].mxu0
        %v537 = vadd.f32 %v437, %v536
        %538 = vmatprep.mubr.bf16.mxu0 0
        %539 = vmatmul.mubr.bf16.gmra.mrb[0].mxu0 %v474
        %v540 = vpop.f32.mrb[0].mxu0
        %v541 = vadd.f32 %v438, %v540
        %v542 = vpop.f32.mrb[0].mxu0
        %v543 = vadd.f32 %v439, %v542
        %v544 = vpop.f32.mrb[0].mxu0
        %v545 = vadd.f32 %v440, %v544
        %v546 = vpop.f32.mrb[0].mxu0
        %v547 = vadd.f32 %v441, %v546
        %548 = vmatprep.mubr.bf16.mxu0 0
        %549 = vmatmul.mubr.bf16.gmra.mrb[0].mxu0 %v477
        %v550 = vpop.f32.mrb[0].mxu0
        %v551 = vadd.f32 %v442, %v550
        %v552 = vpop.f32.mrb[0].mxu0
        %v553 = vadd.f32 %v443, %v552
        %v554 = vpop.f32.mrb[0].mxu0
        %v555 = vadd.f32 %v444, %v554
        %v556 = vpop.f32.mrb[0].mxu0
        %v557 = vadd.f32 %v445, %v556
        %558 = vdwg.mxu0
        %v559 = vmax.f32 %v521, 0.0
        %v560 = vmax.f32 %v523, 0.0
        %v561 = vmax.f32 %v525, 0.0
        %v562 = vmax.f32 %v527, 0.0
        %v563 = vmax.f32 %v531, 0.0
        %v564 = vmax.f32 %v533, 0.0
        %v565 = vmax.f32 %v535, 0.0
        %v566 = vmax.f32 %v537, 0.0
        %v567 = vmax.f32 %v541, 0.0
        %v568 = vmax.f32 %v543, 0.0
        %v569 = vmax.f32 %v545, 0.0
        %v570 = vmax.f32 %v547, 0.0
        %v571 = vmax.f32 %v551, 0.0
        %v572 = vmax.f32 %v553, 0.0
        %v573 = vmax.f32 %v555, 0.0
        %v574 = vmax.f32 %v557, 0.0
        %v575 = vld [vmem:[%s5] sm:$0xf]
        %v576 = vld [vmem:[%s5 + $0x4] sm:$0xf]
        %v577 = vpack.c.bf16 %v561, %v559
        %v578 = vpack.c.bf16 %v562, %v560
        %v579 = vpack.c.bf16 %v565, %v563
        %v580 = vpack.c.bf16 %v566, %v564
        %v581 = vpack.c.bf16 %v569, %v567
        %v582 = vpack.c.bf16 %v570, %v568
        %v583 = vpack.c.bf16 %v573, %v571
        %v584 = vpack.c.bf16 %v574, %v572
        %v585 = vld [vmem:[%s6] sm:$0xff]
        %v586 = vld [vmem:[%s6 + $0x8] sm:$0xff]
        %588 = vset.pattern.permute.xlu0 0
        %589 = vperm.xlu0 %588, %v585
        %v590 = vpop.permute.xlu0 %589
        %593 = vset.pattern.permute.xlu0 0
        %594 = vperm.xlu0 %593, %v586
        %v595 = vpop.permute.xlu0 %594
        %v599 = vunpack.c.l.b16 %v575
        %v600 = vunpack.c.l.b16 %v576
        %v601 = vpack.c.b16 %v600, %v599
        %vm602 = vcmask 523264
        %v604 = vsel %vm602, %v601, 0
        %606 = vmatprep.subr.bf16.mxu0 %v578
        %607 = vmatpush1.bf16.msra.mxu0 %v577
        %608 = vmatprep.subr.bf16.mxu0 %v580
        %609 = vmatpush1.bf16.msra.mxu0 %v579
        %610 = vmatprep.subr.bf16.mxu0 %v582
        %611 = vmatpush1.bf16.msra.mxu0 %v581
        %612 = vmatprep.subr.bf16.mxu0 %v584
        %613 = vmatpush1.bf16.msra.mxu0 %v583
        %614 = vmatprep.subr.bf16.mxu0 0
        %615 = vmatpush1.bf16.msra.mxu0 0
        %616 = vmatprep.subr.bf16.mxu0 0
        %617 = vmatpush1.bf16.msra.mxu0 0
        %618 = vmatprep.subr.bf16.mxu0 0
        %619 = vmatpush1.bf16.msra.mxu0 0
        %620 = vmatprep.subr.bf16.mxu0 0
        %621 = vmatpush1.bf16.msra.mxu0 0
        %622 = vmatprep.subr.bf16.mxu0 0
        %623 = vmatpush1.bf16.msra.mxu0 0
        %624 = vmatprep.subr.bf16.mxu0 0
        %625 = vmatpush1.bf16.msra.mxu0 0
        %626 = vmatprep.subr.bf16.mxu0 0
        %627 = vmatpush1.bf16.msra.mxu0 0
        %628 = vmatprep.subr.bf16.mxu0 0
        %629 = vmatpush1.bf16.msra.mxu0 0
        %630 = vmatprep.subr.bf16.mxu0 0
        %631 = vmatpush1.bf16.msra.mxu0 0
        %632 = vmatprep.subr.bf16.mxu0 0
        %633 = vmatpush1.bf16.msra.mxu0 0
        %634 = vmatprep.subr.bf16.mxu0 0
        %635 = vmatpush1.bf16.msra.mxu0 0
        %636 = vmatprep.subr.bf16.mxu0 0
        %637 = vmatpush1.bf16.msra.mxu0 0
        %638 = vmatprep.mubr.bf16.mxu0 0
        %639 = vmatmul.mubr.bf16.gmra.mrb[0].mxu0 %v604
        %v640 = vpop.f32.mrb[0].mxu0
        %v641 = vadd.f32 %v590, %v640
        %v642 = vpop.f32.mrb[0].mxu0
        %v643 = vadd.f32 %v590, %v642
        %v644 = vpop.f32.mrb[0].mxu0
        %v645 = vadd.f32 %v595, %v644
        %v646 = vpop.f32.mrb[0].mxu0
        %v647 = vadd.f32 %v595, %v646
        %648 = vdwg.mxu0
        %v649 = vtanh.pop %v641
        %v650 = vtanh.pop %v643
        %v651 = vmul.f32 %v649, 1.442695
        %v652 = vpow.pop %v651
        %v653 = vmul.f32 %v650, 1.442695
        %v654 = vpow.pop %v653
        %v655 = vmul.f32 %v418, %v652
        %v656 = vmul.f32 %v419, %v654
        %v657 = vadd.f32 %v655, %v645
        %v658 = vadd.f32 %v656, %v647
        %v659 = vrot.slane %v649, 4
        %v660 = vadd.f32 %v649, %v659
        %v661 = vrot.slane %v660, 2
        %v662 = vadd.f32 %v660, %v661
        %v663 = vrot.slane %v662, 1
        %v664 = vadd.f32 %v662, %v663
        %v665 = vrot.slane %v650, 4
        %v666 = vadd.f32 %v650, %v665
        %v667 = vrot.slane %v666, 2
        %v668 = vadd.f32 %v666, %v667
        %v669 = vrot.slane %v668, 1
        %v670 = vadd.f32 %v668, %v669
        %v671 = vmul.f32 %v416, %v416
        %v672 = vmul.f32 %v417, %v417
        %v673 = vrot.slane %v671, 4
        %v674 = vadd.f32 %v671, %v673
        %v675 = vrot.slane %v674, 2
        %v676 = vadd.f32 %v674, %v675
        %v677 = vrot.slane %v676, 1
        %v678 = vadd.f32 %v676, %v677
        %v679 = vrot.slane %v672, 4
        %v680 = vadd.f32 %v672, %v679
        %v681 = vrot.slane %v680, 2
        %v682 = vadd.f32 %v680, %v681
        %v683 = vrot.slane %v682, 1
        %v684 = vadd.f32 %v682, %v683
        %v685 = vmul.f32 %v657, %v657
        %v686 = vmul.f32 %v658, %v658
        %v687 = vrot.slane %v685, 4
        %v688 = vadd.f32 %v685, %v687
        %v689 = vrot.slane %v688, 2
        %v690 = vadd.f32 %v688, %v689
        %v691 = vrot.slane %v690, 1
        %v692 = vadd.f32 %v690, %v691
        %v693 = vrot.slane %v686, 4
        %v694 = vadd.f32 %v686, %v693
        %v695 = vrot.slane %v694, 2
        %v696 = vadd.f32 %v694, %v695
        %v697 = vrot.slane %v696, 1
        %v698 = vadd.f32 %v696, %v697
        %v699 = vadd.f32 %v678, %v692
        %v700 = vadd.f32 %v684, %v698
        %v701 = vmul.f32 %v699, 0.5
        %v702 = vmul.f32 %v700, 0.5
        %v703 = vsub.f32 -14.703016, %v701
        %v704 = vsub.f32 -14.703016, %v702
        %v705 = vadd.f32 %v703, %v664
        %v706 = vadd.f32 %v704, %v670
        %v707 = vmul.f32 %v705, 0.0625
        %v708 = vmul.f32 %v706, 0.0625
        %v711 = vcombine.low %v707, %v708
        %v713 = vunpack.c.l.s4 1966171168
        %v714 = vunpack.c.0.s8 %v713
        %v715 = vlaneseq
        %v716 = vshrl.u32 %v715, 7
        %v717 = vsub.s32 %v714, %v716
        %v718 = vrot.slane %v711, %v717
        %v720 = vunpack.c.l.s4 1966171168
        %v721 = vunpack.c.0.s8 %v720
        %v722 = vlaneseq
        %v723 = vshrl.u32 %v722, 7
        %v724 = vsub.s32 %v721, %v723
        %v725 = vrot.slane %v718, %v724
        %v727 = vlaneseq
        %vm728 = vcmp.ge.s32.totalorder %v727, 0
        %vm729 = vcmp.lt.s32.totalorder %v727, 256
        %vm730 = vmand %vm728, %vm729
        %731 = vst.msk [vmem:[%s287] sm:$0x3] %vm730, %v725
        %s732 = sand.u32 %s182, 1
        %s733 = scalar_lea.sflag [#allocation4], %s732
        %s734 = sand.u32 %s182, 1
        %s735 = smul.addr %s734, 2
        %s736 = scalar_lea.vmem [#allocation5], %s735
        // Predicated region
        $region53: #{tpu_custom_call.1} parent=47 // pred_check
          %p737 = pneg %p192
        $region54: #{tpu_custom_call.1} parent=47 // pred_check_branch
          %739 = sbr.rel (%p737) target = $region56
        $region55: #{tpu_custom_call.1} parent=47 // pred_region
          %s740 = smul.u32 2, %s22
          %s742 = ssub.s32 32, 32
          %743 = vsyncadd %s733, %s742
          %s744 = smul.addr %s740, 16
          %s745 = scalar_lea.hbm %s7, %s744
          %s747 = sshll.u32 %s736, 4
          %s748 = int_to_ptr.vmem [resolvable:$true] %s747
          %750 = dma.vmem_to_hbm [thread:$0]  %s748, 32, %s745, %s733
        $region56: #{tpu_custom_call.1} parent=47 // pred_fallthru
          _
      $region48: #{tpu_custom_call.1} parent=5 // pred_fallthru
        _
      %p751 = scmp.le.s32.totalorder 2, %s17
      // Predicated region
      $region57: #{tpu_custom_call.1} parent=5 // pred_check
        %p752 = pneg %p751
      $region58: #{tpu_custom_call.1} parent=5 // pred_check_branch
        %754 = sbr.rel (%p752) target = $region60
      $region59: #{tpu_custom_call.1} parent=5 // pred_region
        %s755 = ssub.s32 %s17, 2
        // Predicated region
        $region61: #{tpu_custom_call.1} parent=59 // pred_check
          %p756 = pneg %p198
        $region62: #{tpu_custom_call.1} parent=59 // pred_check_branch
          %758 = sbr.rel (%p756) target = $region64
        $region63: #{tpu_custom_call.1} parent=59 // pred_region
          %s759 = sand.u32 %s183, 1
          %s760 = scalar_lea.sflag [#allocation4], %s759
          %s761 = sand.u32 %s183, 1
          %s762 = smul.addr %s761, 2
          %s763 = scalar_lea.vmem [#allocation5], %s762
          %764 = dma.done %s760, 32
        $region64: #{tpu_custom_call.1} parent=59 // pred_fallthru
          _
      $region60: #{tpu_custom_call.1} parent=5 // pred_fallthru
        _
    $region6: #{tpu_custom_call.1} parent=1 // loop_footer
      %s21 = sadd.s32 1, %s17
    $region7: #{tpu_custom_call.1} parent=1 // loop_footer_branch
      %16 = sbr.rel target = $region3
    $region8: #{tpu_custom_call.1} parent=1 // loop_exit
      _
    %765 = vsyncpa [#allocation3], 1
    %s766 = scalar_lea.sflag [#allocation3], 1
    %767 = vsyncpa %s766, 1
    %768 = vsyncpa [#allocation4], 1
    %s769 = scalar_lea.sflag [#allocation4], 1
    %770 = vsyncpa %s769, 1

</llo_original>
